<compile_context>
chip_gen: v6e
topology: v6e:2x2x1
jax: 0.10.0
libtpu: 0.0.40
codegen_flags: <defaults>
</compile_context>

<pallas_src>
import jax
import jax.numpy as jnp
from jax.experimental import pallas as pl
from jax.experimental.pallas import tpu as pltpu


def _round_up(n, m):
    return ((n + m - 1) // m) * m


def _cdiv(a, b):
    return (a + b - 1) // b


def _softplus(v):
    # Stable softplus: max(v, 0) + log1p(exp(-|v|))  (exp + log1p run on the EUP)
    return jnp.maximum(v, 0.0) + jnp.log1p(jnp.exp(-jnp.abs(v)))


def encoder_kernel(y_ref, x_ref, wy_ref, wx_ref, by_ref, bx_ref,
                   w2y_ref, w2x_ref, b2_ref, out_ref):
    cdt = wy_ref.dtype   # MXU operand dtype (activations cast in-kernel)

    # Layer 1: two independent Linear + softplus branches (f32 accumulate/math).
    hy = jnp.dot(y_ref[...].astype(cdt), wy_ref[...],
                 preferred_element_type=jnp.float32) + by_ref[...]
    hx = jnp.dot(x_ref[...].astype(cdt), wx_ref[...],
                 preferred_element_type=jnp.float32) + bx_ref[...]
    hy = _softplus(hy)
    hx = _softplus(hx)

    # Layer 2: concat([hy, hx], 1) @ [W21.T|W22.T]  ==  hy @ W2y + hx @ W2x.
    z = (jnp.dot(hy.astype(cdt), w2y_ref[...], preferred_element_type=jnp.float32)
         + jnp.dot(hx.astype(cdt), w2x_ref[...], preferred_element_type=jnp.float32)
         + b2_ref[...])

    # Packed output: [z_loc | exp(z_scale_raw)].
    zp = out_ref.shape[-1] // 2
    if zp % 128 == 0:
        # Lane-aligned halves: exp only on the scale half, two aligned stores.
        out_ref[:, :zp] = z[:, :zp].astype(out_ref.dtype)
        out_ref[:, zp:] = jnp.exp(z[:, zp:]).astype(out_ref.dtype)
    else:
        # Tiny / unaligned z widths (fit in one vreg anyway): masked select.
        col = jax.lax.broadcasted_iota(jnp.int32, z.shape, 1)
        out_ref[...] = jnp.where(col < zp, z, jnp.exp(z)).astype(out_ref.dtype)


def _vmem_budget_bytes():
    cap = 64 * 1024 * 1024          # v7x-safe fallback (64 MiB VMEM per TC)
    try:
        cap = int(getattr(pltpu.get_tpu_info(), "vmem_capacity_bytes", cap))
    except Exception:
        pass
    return max(16 * 1024 * 1024, cap // 2)


def _derive_batch_tile(batch, y_dim, x_dim, hp, z2, cbytes, out_bytes,
                       block_b, vmem_budget):
    """Largest batch tile (multiple of 8) that fits the VMEM budget."""
    # Per-row VMEM: double-buffered input/output tiles + f32 temporaries.
    per_row = 2 * (y_dim + x_dim) * 4            # y, x tiles (f32, 2 buffers)
    per_row += 2 * z2 * out_bytes                # packed out tile (2 buffers)
    per_row += 2 * hp * 4 + z2 * 4               # hy/hx and z f32 values
    if cbytes != 4:
        per_row += (y_dim + x_dim + 2 * hp) * cbytes   # in-kernel casts
    # Weights/biases; assume 2 buffers in case single-buffering is unavailable.
    wbytes = 2 * (((y_dim + x_dim) * hp + 2 * hp * z2) * cbytes
                  + (2 * hp + z2) * 4)
    slack = 2 * 1024 * 1024                      # compiler-internal scratch
    tb = (vmem_budget - wbytes - slack) // max(per_row, 1)
    tb = max(8, min(block_b, tb))
    tb = max(8, (tb // 8) * 8)
    # Give v7x's two TensorCores at least 2 grid steps once the batch is big.
    tb = min(tb, _round_up(_cdiv(max(batch, 1), 2), 8))
    return max(tb, 8)


def encoder_forward(y, x, packed_params, *, y_dim, x_dim, z_dim,
                    compute_dtype=jnp.bfloat16, out_dtype=jnp.float32,
                    block_b=8192):
    """Fused Pallas encoder forward.

    compute_dtype: MXU operand dtype (bf16 recommended on v6e/v7x; f32 for
    bit-accurate checks).  Accumulation and elementwise math stay f32.
    out_dtype: dtype of the packed [z_loc | z_scale] output written to HBM.
    """
    wy, wx, by, bx, w2y, w2x, b2 = packed_params
    hp = wy.shape[1]             # (possibly lane-padded) hidden width per branch
    z2 = b2.shape[1]             # 2 * (possibly lane-padded) z width
    zp = z2 // 2

    # Activations stay f32 in HBM (reshape is free; no concat/pad/cast copies).
    y2 = y.reshape(-1, y_dim).astype(jnp.float32)
    x2 = x.reshape(-1, x_dim).astype(jnp.float32)
    B = y2.shape[0]
    assert x2.shape[0] == B, "y and x must flatten to the same batch size"

    cbytes = jnp.dtype(compute_dtype).itemsize
    obytes = jnp.dtype(out_dtype).itemsize
    vmem_budget = _vmem_budget_bytes()
    tb = _derive_batch_tile(B, y_dim, x_dim, hp, z2, cbytes, obytes,
                            block_b, vmem_budget)
    grid = (_cdiv(B, tb),)

    wy_c = wy.astype(compute_dtype)
    wx_c = wx.astype(compute_dtype)
    w2y_c = w2y.astype(compute_dtype)
    w2x_c = w2x.astype(compute_dtype)
    by_f = by.astype(jnp.float32)
    bx_f = bx.astype(jnp.float32)
    b2_f = b2.astype(jnp.float32)

    cost = pl.CostEstimate(
        flops=2 * B * ((y_dim + x_dim) * hp + 2 * hp * z2),
        transcendentals=B * (4 * hp + zp),
        bytes_accessed=int(B * (y_dim + x_dim) * 4 + B * z2 * obytes
                           + ((y_dim + x_dim) * hp + 2 * hp * z2) * cbytes
                           + (2 * hp + z2) * 4),
    )

    def _const_spec(shape, mode):
        if mode is None:
            return pl.BlockSpec(shape, lambda i: (0, 0))
        return pl.BlockSpec(shape, lambda i: (0, 0), pipeline_mode=mode)

    def _run(weight_mode):
        return pl.pallas_call(
            encoder_kernel,
            out_shape=jax.ShapeDtypeStruct((B, z2), out_dtype),
            grid=grid,
            in_specs=[
                pl.BlockSpec((tb, y_dim), lambda i: (i, 0)),    # y, batch-blocked
                pl.BlockSpec((tb, x_dim), lambda i: (i, 0)),    # x, batch-blocked
                _const_spec((y_dim, hp), weight_mode),          # Wy.T
                _const_spec((x_dim, hp), weight_mode),          # Wx.T
                _const_spec((1, hp), weight_mode),              # by
                _const_spec((1, hp), weight_mode),              # bx
                _const_spec((hp, z2), weight_mode),             # [W21.T|W22.T][:H]
                _const_spec((hp, z2), weight_mode),             # [W21.T|W22.T][H:]
                _const_spec((1, z2), weight_mode),              # [b21|b22]
            ],
            out_specs=pl.BlockSpec((tb, z2), lambda i: (i, 0)),
            compiler_params=pltpu.CompilerParams(
                dimension_semantics=("parallel",),
                vmem_limit_bytes=int(vmem_budget)),
            cost_estimate=cost,
        )(y2, x2, wy_c, wx_c, by_f, bx_f, w2y_c, w2x_c, b2_f)

    try:
        # Constant-index operands only need a single VMEM buffer.
        out = _run(pl.Buffered(1))
    except Exception:
        # Fallback if this jax build rejects pipeline_mode on pallas_call specs.
        out = _run(None)

    z_loc = out[:, :z_dim]
    z_scale = out[:, zp:zp + z_dim]
    return z_loc, z_scale


def xavier_uniform(key, out_features, in_features):
    # torch.nn.init.xavier_uniform_ on a [out, in] Linear weight
    bound = (6.0 / (in_features + out_features)) ** 0.5
    return jax.random.uniform(key, (out_features, in_features),
                              minval=-bound, maxval=bound, dtype=jnp.float32)


def init_encoder_params(key, z_dim, hidden_dim, y_dim, x_dim):
    """Raw PyTorch-layout parameters ([out, in] weights, zero biases)."""
    k1, k2, k3, k4 = jax.random.split(key, 4)
    return dict(
        wy=xavier_uniform(k1, hidden_dim, y_dim),          # [H, Yd]
        wx=xavier_uniform(k2, hidden_dim, x_dim),          # [H, Xd]
        w21=xavier_uniform(k3, z_dim, 2 * hidden_dim),     # [Z, 2H]
        w22=xavier_uniform(k4, z_dim, 2 * hidden_dim),     # [Z, 2H]
        by=jnp.zeros((hidden_dim,), jnp.float32),
        bx=jnp.zeros((hidden_dim,), jnp.float32),
        b21=jnp.zeros((z_dim,), jnp.float32),
        b22=jnp.zeros((z_dim,), jnp.float32),
    )


def pack_encoder_params(raw, *, y_dim, x_dim, hidden_dim, z_dim, lane_multiple=1):
    """Pre-pack parameters into the fused layout used by the kernel.

    lane_multiple: optionally pad the per-branch hidden width and the z width
    up to this multiple (e.g. 128 on v5e, 256 on v6e/v7x) so layer outputs and
    the packed output store are lane-dense at realistic sizes.  Padding is
    exact (zero weights/biases contribute nothing).
    """
    hp = _round_up(hidden_dim, lane_multiple)
    zq = _round_up(z_dim, lane_multiple)

    def pad_to(a, rows, cols):
        return jnp.pad(a, ((0, rows - a.shape[0]), (0, cols - a.shape[1])))

    wy = pad_to(raw["wy"].T, y_dim, hp)                     # [Yd, Hp]
    wx = pad_to(raw["wx"].T, x_dim, hp)                     # [Xd, Hp]
    by = pad_to(raw["by"][None, :], 1, hp)                  # [1, Hp]
    bx = pad_to(raw["bx"][None, :], 1, hp)                  # [1, Hp]

    w21t = raw["w21"].T                                     # [2H, Z]
    w22t = raw["w22"].T                                     # [2H, Z]
    # Rows of the fused [W21.T | W22.T] that multiply hiddeny / hiddenx.
    w2y = jnp.concatenate([pad_to(w21t[:hidden_dim], hidden_dim, zq),
                           pad_to(w22t[:hidden_dim], hidden_dim, zq)], axis=1)
    w2x = jnp.concatenate([pad_to(w21t[hidden_dim:], hidden_dim, zq),
                           pad_to(w22t[hidden_dim:], hidden_dim, zq)], axis=1)
    w2y = pad_to(w2y, hp, 2 * zq)                           # [Hp, 2Zq]
    w2x = pad_to(w2x, hp, 2 * zq)                           # [Hp, 2Zq]
    b2 = jnp.concatenate([pad_to(raw["b21"][None, :], 1, zq),
                          pad_to(raw["b22"][None, :], 1, zq)], axis=1)   # [1, 2Zq]
    return (wy, wx, by, bx, w2y, w2x, b2)


def encoder_reference(y, x, raw, *, y_dim, x_dim):
    """Pure-JAX f32 reference matching the PyTorch module."""
    y2 = y.reshape(-1, y_dim).astype(jnp.float32)
    x2 = x.reshape(-1, x_dim).astype(jnp.float32)
    hy = jax.nn.softplus(y2 @ raw["wy"].T + raw["by"])
    hx = jax.nn.softplus(x2 @ raw["wx"].T + raw["bx"])
    hidden = jnp.concatenate([hy, hx], axis=1)
    z_loc = hidden @ raw["w21"].T + raw["b21"]
    z_scale = jnp.exp(hidden @ raw["w22"].T + raw["b22"])
    return z_loc, z_scale


if __name__ == "__main__":
    # Small, forward-implied shapes
    z_dim, hidden_dim, y_dim, x_dim = 8, 32, 16, 12
    batch_outer, batch_inner = 2, 4            # inputs flatten to B = 8

    key = jax.random.PRNGKey(0)
    kp, ky, kx, kyb, kxb = jax.random.split(key, 5)

    raw = init_encoder_params(kp, z_dim, hidden_dim, y_dim, x_dim)
    packed = pack_encoder_params(raw, y_dim=y_dim, x_dim=x_dim,
                                 hidden_dim=hidden_dim, z_dim=z_dim)

    y = jax.random.normal(ky, (batch_outer, batch_inner, y_dim), dtype=jnp.float32)
    x = jax.random.normal(kx, (batch_outer, batch_inner, x_dim), dtype=jnp.float32)
    ref_loc, ref_scale = encoder_reference(y, x, raw, y_dim=y_dim, x_dim=x_dim)

    # 1) f32 MXU operands: tight check against the pure-JAX reference.
    z_loc, z_scale = encoder_forward(y, x, packed, y_dim=y_dim, x_dim=x_dim,
                                     z_dim=z_dim, compute_dtype=jnp.float32)
    jax.block_until_ready((z_loc, z_scale))
    assert z_loc.shape == (batch_outer * batch_inner, z_dim)
    assert z_scale.shape == (batch_outer * batch_inner, z_dim)
    assert jnp.allclose(z_loc, ref_loc, atol=1e-4, rtol=1e-4)
    assert jnp.allclose(z_scale, ref_scale, atol=1e-4, rtol=1e-4)

    # 2) bf16 MXU operands + bf16 packed output (v6e/v7x fast path): loose check.
    zl_bf, zs_bf = encoder_forward(y, x, packed, y_dim=y_dim, x_dim=x_dim,
                                   z_dim=z_dim, compute_dtype=jnp.bfloat16,
                                   out_dtype=jnp.bfloat16)
    jax.block_until_ready((zl_bf, zs_bf))
    assert jnp.allclose(zl_bf.astype(jnp.float32), ref_loc, atol=0.15, rtol=0.15)
    assert jnp.allclose(zs_bf.astype(jnp.float32), ref_scale, atol=0.15, rtol=0.15)

    # 3) Lane-dense packing (H, Z padded to 128): exact, f32 check.
    packed128 = pack_encoder_params(raw, y_dim=y_dim, x_dim=x_dim,
                                    hidden_dim=hidden_dim, z_dim=z_dim,
                                    lane_multiple=128)
    zl_p, zs_p = encoder_forward(y, x, packed128, y_dim=y_dim, x_dim=x_dim,
                                 z_dim=z_dim, compute_dtype=jnp.float32)
    jax.block_until_ready((zl_p, zs_p))
    assert jnp.allclose(zl_p, ref_loc, atol=1e-4, rtol=1e-4)
    assert jnp.allclose(zs_p, ref_scale, atol=1e-4, rtol=1e-4)

    # 4) Large ragged batch: multi-step grid + masked tail block, f32.
    Bbig = 2049
    yb = jax.random.normal(kyb, (Bbig, y_dim), dtype=jnp.float32)
    xb = jax.random.normal(kxb, (Bbig, x_dim), dtype=jnp.float32)
    ref_loc_b, ref_scale_b = encoder_reference(yb, xb, raw, y_dim=y_dim, x_dim=x_dim)
    zl_b, zs_b = encoder_forward(yb, xb, packed, y_dim=y_dim, x_dim=x_dim,
                                 z_dim=z_dim, compute_dtype=jnp.float32)
    jax.block_until_ready((zl_b, zs_b))
    assert zl_b.shape == (Bbig, z_dim) and zs_b.shape == (Bbig, z_dim)
    assert jnp.allclose(zl_b, ref_loc_b, atol=1e-3, rtol=1e-3)
    assert jnp.allclose(zs_b, ref_scale_b, atol=1e-3, rtol=1e-3)

    print("KERNEL_OK")
</pallas_src>

<mosaic_0001>
module attributes {stable_mosaic.version = 11 : i64} {
  func.func @encoder_kernel(%arg0: i32, %arg1: memref<8x16xf32, #tpu.memory_space<vmem>>, %arg2: memref<8x12xf32, #tpu.memory_space<vmem>>, %arg3: memref<16x32xf32, #tpu.memory_space<vmem>>, %arg4: memref<12x32xf32, #tpu.memory_space<vmem>>, %arg5: memref<1x32xf32, #tpu.memory_space<vmem>>, %arg6: memref<1x32xf32, #tpu.memory_space<vmem>>, %arg7: memref<32x16xf32, #tpu.memory_space<vmem>>, %arg8: memref<32x16xf32, #tpu.memory_space<vmem>>, %arg9: memref<1x16xf32, #tpu.memory_space<vmem>>, %arg10: memref<8x16xf32, #tpu.memory_space<vmem>>) attributes {dimension_semantics = [#tpu.dimension_semantics<parallel>], iteration_bounds = array<i64: 1>, scalar_prefetch = 0 : i64, scratch_operands = 0 : i64, tpu.core_type = #tpu.core_type<tc>, window_params = [{transform_indices = @transform_0, window_bounds = array<i64: 8, 16>}, {transform_indices = @transform_1, window_bounds = array<i64: 8, 12>}, {pipeline_mode = #tpu.pipeline_mode<synchronous>, transform_indices = @transform_2, window_bounds = array<i64: 16, 32>}, {pipeline_mode = #tpu.pipeline_mode<synchronous>, transform_indices = @transform_3, window_bounds = array<i64: 12, 32>}, {pipeline_mode = #tpu.pipeline_mode<synchronous>, transform_indices = @transform_4, window_bounds = array<i64: 1, 32>}, {pipeline_mode = #tpu.pipeline_mode<synchronous>, transform_indices = @transform_5, window_bounds = array<i64: 1, 32>}, {pipeline_mode = #tpu.pipeline_mode<synchronous>, transform_indices = @transform_6, window_bounds = array<i64: 32, 16>}, {pipeline_mode = #tpu.pipeline_mode<synchronous>, transform_indices = @transform_7, window_bounds = array<i64: 32, 16>}, {pipeline_mode = #tpu.pipeline_mode<synchronous>, transform_indices = @transform_8, window_bounds = array<i64: 1, 16>}, {transform_indices = @transform_9, window_bounds = array<i64: 8, 16>}]} {
    %c0 = arith.constant 0 : index
    %c0_0 = arith.constant 0 : index
    %0 = vector.load %arg1[%c0, %c0_0] : memref<8x16xf32, #tpu.memory_space<vmem>>, vector<8x16xf32>
    %c0_1 = arith.constant 0 : index
    %c0_2 = arith.constant 0 : index
    %1 = vector.load %arg3[%c0_1, %c0_2] : memref<16x32xf32, #tpu.memory_space<vmem>>, vector<16x32xf32>
    %cst = arith.constant dense<0.000000e+00> : vector<8x32xf32>
    %2 = tpu.matmul %0, %1, %cst {dimension_numbers = #tpu.dot_dimension_numbers<[1], [0], [0], [1], [0, 0, 1, 1], [], []>} : vector<8x16xf32>, vector<16x32xf32>, vector<8x32xf32> -> vector<8x32xf32>
    %c0_3 = arith.constant 0 : index
    %c0_4 = arith.constant 0 : index
    %3 = vector.load %arg5[%c0_3, %c0_4] : memref<1x32xf32, #tpu.memory_space<vmem>>, vector<1x32xf32>
    %4 = vector.broadcast %3 : vector<1x32xf32> to vector<8x32xf32>
    %5 = arith.addf %2, %4 : vector<8x32xf32>
    %c0_5 = arith.constant 0 : index
    %c0_6 = arith.constant 0 : index
    %6 = vector.load %arg2[%c0_5, %c0_6] : memref<8x12xf32, #tpu.memory_space<vmem>>, vector<8x12xf32>
    %c0_7 = arith.constant 0 : index
    %c0_8 = arith.constant 0 : index
    %7 = vector.load %arg4[%c0_7, %c0_8] : memref<12x32xf32, #tpu.memory_space<vmem>>, vector<12x32xf32>
    %cst_9 = arith.constant dense<0.000000e+00> : vector<8x32xf32>
    %8 = tpu.matmul %6, %7, %cst_9 {dimension_numbers = #tpu.dot_dimension_numbers<[1], [0], [0], [1], [0, 0, 1, 1], [], []>} : vector<8x12xf32>, vector<12x32xf32>, vector<8x32xf32> -> vector<8x32xf32>
    %c0_10 = arith.constant 0 : index
    %c0_11 = arith.constant 0 : index
    %9 = vector.load %arg6[%c0_10, %c0_11] : memref<1x32xf32, #tpu.memory_space<vmem>>, vector<1x32xf32>
    %10 = vector.broadcast %9 : vector<1x32xf32> to vector<8x32xf32>
    %11 = arith.addf %8, %10 : vector<8x32xf32>
    %cst_12 = arith.constant 0.000000e+00 : f32
    %12 = vector.broadcast %cst_12 : f32 to vector<8x32xf32>
    %13 = arith.maximumf %5, %12 : vector<8x32xf32>
    %14 = math.absf %5 : vector<8x32xf32>
    %cst_13 = arith.constant 0.000000e+00 : f32
    %15 = vector.broadcast %cst_13 : f32 to vector<8x32xf32>
    %16 = arith.subf %15, %14 : vector<8x32xf32>
    %17 = math.exp %16 : vector<8x32xf32>
    %18 = math.log1p %17 : vector<8x32xf32>
    %19 = arith.addf %13, %18 : vector<8x32xf32>
    %cst_14 = arith.constant 0.000000e+00 : f32
    %20 = vector.broadcast %cst_14 : f32 to vector<8x32xf32>
    %21 = arith.maximumf %11, %20 : vector<8x32xf32>
    %22 = math.absf %11 : vector<8x32xf32>
    %cst_15 = arith.constant 0.000000e+00 : f32
    %23 = vector.broadcast %cst_15 : f32 to vector<8x32xf32>
    %24 = arith.subf %23, %22 : vector<8x32xf32>
    %25 = math.exp %24 : vector<8x32xf32>
    %26 = math.log1p %25 : vector<8x32xf32>
    %27 = arith.addf %21, %26 : vector<8x32xf32>
    %c0_16 = arith.constant 0 : index
    %c0_17 = arith.constant 0 : index
    %28 = vector.load %arg7[%c0_16, %c0_17] : memref<32x16xf32, #tpu.memory_space<vmem>>, vector<32x16xf32>
    %cst_18 = arith.constant dense<0.000000e+00> : vector<8x16xf32>
    %29 = tpu.matmul %19, %28, %cst_18 {dimension_numbers = #tpu.dot_dimension_numbers<[1], [0], [0], [1], [0, 0, 1, 1], [], []>} : vector<8x32xf32>, vector<32x16xf32>, vector<8x16xf32> -> vector<8x16xf32>
    %c0_19 = arith.constant 0 : index
    %c0_20 = arith.constant 0 : index
    %30 = vector.load %arg8[%c0_19, %c0_20] : memref<32x16xf32, #tpu.memory_space<vmem>>, vector<32x16xf32>
    %cst_21 = arith.constant dense<0.000000e+00> : vector<8x16xf32>
    %31 = tpu.matmul %27, %30, %cst_21 {dimension_numbers = #tpu.dot_dimension_numbers<[1], [0], [0], [1], [0, 0, 1, 1], [], []>} : vector<8x32xf32>, vector<32x16xf32>, vector<8x16xf32> -> vector<8x16xf32>
    %32 = arith.addf %29, %31 : vector<8x16xf32>
    %c0_22 = arith.constant 0 : index
    %c0_23 = arith.constant 0 : index
    %33 = vector.load %arg9[%c0_22, %c0_23] : memref<1x16xf32, #tpu.memory_space<vmem>>, vector<1x16xf32>
    %34 = vector.broadcast %33 : vector<1x16xf32> to vector<8x16xf32>
    %35 = arith.addf %32, %34 : vector<8x16xf32>
    %36 = tpu.iota {dimensions = array<i32: 1>} : vector<8x16xi32>
    %c8_i32 = arith.constant 8 : i32
    %37 = vector.broadcast %c8_i32 : i32 to vector<8x16xi32>
    %38 = arith.cmpi slt, %36, %37 : vector<8x16xi32>
    %39 = math.exp %35 : vector<8x16xf32>
    %40 = arith.select %38, %35, %39 : vector<8x16xi1>, vector<8x16xf32>
    %c0_24 = arith.constant 0 : index
    %c0_25 = arith.constant 0 : index
    %41 = vector.load %arg10[%c0_24, %c0_25] : memref<8x16xf32, #tpu.memory_space<vmem>>, vector<8x16xf32>
    tpu.vector_store %arg10[%c0_24, %c0_25], %40 {strides = array<i32>} : memref<8x16xf32, #tpu.memory_space<vmem>>, vector<8x16xf32>,
    return
  }
  func.func @transform_0(%arg0: i32) -> (i32, i32) {
    %c0_i32 = arith.constant 0 : i32
    %c0_i32_0 = arith.constant 0 : i32
    return %arg0, %c0_i32 : i32, i32
  }
  func.func @transform_1(%arg0: i32) -> (i32, i32) {
    %c0_i32 = arith.constant 0 : i32
    %c0_i32_0 = arith.constant 0 : i32
    return %arg0, %c0_i32 : i32, i32
  }
  func.func @transform_2(%arg0: i32) -> (i32, i32) {
    %c0_i32 = arith.constant 0 : i32
    %c0_i32_0 = arith.constant 0 : i32
    %c0_i32_1 = arith.constant 0 : i32
    return %c0_i32, %c0_i32_0 : i32, i32
  }
  func.func @transform_3(%arg0: i32) -> (i32, i32) {
    %c0_i32 = arith.constant 0 : i32
    %c0_i32_0 = arith.constant 0 : i32
    %c0_i32_1 = arith.constant 0 : i32
    return %c0_i32, %c0_i32_0 : i32, i32
  }
  func.func @transform_4(%arg0: i32) -> (i32, i32) {
    %c0_i32 = arith.constant 0 : i32
    %c0_i32_0 = arith.constant 0 : i32
    %c0_i32_1 = arith.constant 0 : i32
    return %c0_i32, %c0_i32_0 : i32, i32
  }
  func.func @transform_5(%arg0: i32) -> (i32, i32) {
    %c0_i32 = arith.constant 0 : i32
    %c0_i32_0 = arith.constant 0 : i32
    %c0_i32_1 = arith.constant 0 : i32
    return %c0_i32, %c0_i32_0 : i32, i32
  }
  func.func @transform_6(%arg0: i32) -> (i32, i32) {
    %c0_i32 = arith.constant 0 : i32
    %c0_i32_0 = arith.constant 0 : i32
    %c0_i32_1 = arith.constant 0 : i32
    return %c0_i32, %c0_i32_0 : i32, i32
  }
  func.func @transform_7(%arg0: i32) -> (i32, i32) {
    %c0_i32 = arith.constant 0 : i32
    %c0_i32_0 = arith.constant 0 : i32
    %c0_i32_1 = arith.constant 0 : i32
    return %c0_i32, %c0_i32_0 : i32, i32
  }
  func.func @transform_8(%arg0: i32) -> (i32, i32) {
    %c0_i32 = arith.constant 0 : i32
    %c0_i32_0 = arith.constant 0 : i32
    %c0_i32_1 = arith.constant 0 : i32
    return %c0_i32, %c0_i32_0 : i32, i32
  }
  func.func @transform_9(%arg0: i32) -> (i32, i32) {
    %c0_i32 = arith.constant 0 : i32
    %c0_i32_0 = arith.constant 0 : i32
    return %arg0, %c0_i32 : i32, i32
  }
}

module attributes {stable_mosaic.version = 11 : i64} {
  func.func @encoder_kernel(%arg0: i32, %arg1: memref<8x16xf32, #tpu.memory_space<vmem>>, %arg2: memref<8x12xf32, #tpu.memory_space<vmem>>, %arg3: memref<16x32xf32, #tpu.memory_space<vmem>>, %arg4: memref<12x32xf32, #tpu.memory_space<vmem>>, %arg5: memref<1x32xf32, #tpu.memory_space<vmem>>, %arg6: memref<1x32xf32, #tpu.memory_space<vmem>>, %arg7: memref<32x16xf32, #tpu.memory_space<vmem>>, %arg8: memref<32x16xf32, #tpu.memory_space<vmem>>, %arg9: memref<1x16xf32, #tpu.memory_space<vmem>>, %arg10: memref<8x16xf32, #tpu.memory_space<vmem>>) attributes {dimension_semantics = [#tpu.dimension_semantics<parallel>], iteration_bounds = array<i64: 1>, scalar_prefetch = 0 : i64, scratch_operands = 0 : i64, tpu.core_type = #tpu.core_type<tc>, window_params = [{transform_indices = @transform_0, window_bounds = array<i64: 8, 16>}, {transform_indices = @transform_1, window_bounds = array<i64: 8, 12>}, {pipeline_mode = #tpu.pipeline_mode<synchronous>, transform_indices = @transform_2, window_bounds = array<i64: 16, 32>}, {pipeline_mode = #tpu.pipeline_mode<synchronous>, transform_indices = @transform_3, window_bounds = array<i64: 12, 32>}, {pipeline_mode = #tpu.pipeline_mode<synchronous>, transform_indices = @transform_4, window_bounds = array<i64: 1, 32>}, {pipeline_mode = #tpu.pipeline_mode<synchronous>, transform_indices = @transform_5, window_bounds = array<i64: 1, 32>}, {pipeline_mode = #tpu.pipeline_mode<synchronous>, transform_indices = @transform_6, window_bounds = array<i64: 32, 16>}, {pipeline_mode = #tpu.pipeline_mode<synchronous>, transform_indices = @transform_7, window_bounds = array<i64: 32, 16>}, {pipeline_mode = #tpu.pipeline_mode<synchronous>, transform_indices = @transform_8, window_bounds = array<i64: 1, 16>}, {transform_indices = @transform_9, window_bounds = array<i64: 8, 16>}]} {
    %c0 = arith.constant 0 : index
    %c0_0 = arith.constant 0 : index
    %0 = vector.load %arg1[%c0, %c0_0] : memref<8x16xf32, #tpu.memory_space<vmem>>, vector<8x16xf32>
    %c0_1 = arith.constant 0 : index
    %c0_2 = arith.constant 0 : index
    %1 = vector.load %arg3[%c0_1, %c0_2] : memref<16x32xf32, #tpu.memory_space<vmem>>, vector<16x32xf32>
    %cst = arith.constant dense<0.000000e+00> : vector<8x32xf32>
    %2 = tpu.matmul %0, %1, %cst {dimension_numbers = #tpu.dot_dimension_numbers<[1], [0], [0], [1], [0, 0, 1, 1], [], []>} : vector<8x16xf32>, vector<16x32xf32>, vector<8x32xf32> -> vector<8x32xf32>
    %c0_3 = arith.constant 0 : index
    %c0_4 = arith.constant 0 : index
    %3 = vector.load %arg5[%c0_3, %c0_4] : memref<1x32xf32, #tpu.memory_space<vmem>>, vector<1x32xf32>
    %4 = vector.broadcast %3 : vector<1x32xf32> to vector<8x32xf32>
    %5 = arith.addf %2, %4 : vector<8x32xf32>
    %c0_5 = arith.constant 0 : index
    %c0_6 = arith.constant 0 : index
    %6 = vector.load %arg2[%c0_5, %c0_6] : memref<8x12xf32, #tpu.memory_space<vmem>>, vector<8x12xf32>
    %c0_7 = arith.constant 0 : index
    %c0_8 = arith.constant 0 : index
    %7 = vector.load %arg4[%c0_7, %c0_8] : memref<12x32xf32, #tpu.memory_space<vmem>>, vector<12x32xf32>
    %cst_9 = arith.constant dense<0.000000e+00> : vector<8x32xf32>
    %8 = tpu.matmul %6, %7, %cst_9 {dimension_numbers = #tpu.dot_dimension_numbers<[1], [0], [0], [1], [0, 0, 1, 1], [], []>} : vector<8x12xf32>, vector<12x32xf32>, vector<8x32xf32> -> vector<8x32xf32>
    %c0_10 = arith.constant 0 : index
    %c0_11 = arith.constant 0 : index
    %9 = vector.load %arg6[%c0_10, %c0_11] : memref<1x32xf32, #tpu.memory_space<vmem>>, vector<1x32xf32>
    %10 = vector.broadcast %9 : vector<1x32xf32> to vector<8x32xf32>
    %11 = arith.addf %8, %10 : vector<8x32xf32>
    %cst_12 = arith.constant 0.000000e+00 : f32
    %12 = vector.broadcast %cst_12 : f32 to vector<8x32xf32>
    %13 = arith.maximumf %5, %12 : vector<8x32xf32>
    %14 = math.absf %5 : vector<8x32xf32>
    %cst_13 = arith.constant 0.000000e+00 : f32
    %15 = vector.broadcast %cst_13 : f32 to vector<8x32xf32>
    %16 = arith.subf %15, %14 : vector<8x32xf32>
    %17 = math.exp %16 : vector<8x32xf32>
    %18 = math.log1p %17 : vector<8x32xf32>
    %19 = arith.addf %13, %18 : vector<8x32xf32>
    %cst_14 = arith.constant 0.000000e+00 : f32
    %20 = vector.broadcast %cst_14 : f32 to vector<8x32xf32>
    %21 = arith.maximumf %11, %20 : vector<8x32xf32>
    %22 = math.absf %11 : vector<8x32xf32>
    %cst_15 = arith.constant 0.000000e+00 : f32
    %23 = vector.broadcast %cst_15 : f32 to vector<8x32xf32>
    %24 = arith.subf %23, %22 : vector<8x32xf32>
    %25 = math.exp %24 : vector<8x32xf32>
    %26 = math.log1p %25 : vector<8x32xf32>
    %27 = arith.addf %21, %26 : vector<8x32xf32>
    %c0_16 = arith.constant 0 : index
    %c0_17 = arith.constant 0 : index
    %28 = vector.load %arg7[%c0_16, %c0_17] : memref<32x16xf32, #tpu.memory_space<vmem>>, vector<32x16xf32>
    %cst_18 = arith.constant dense<0.000000e+00> : vector<8x16xf32>
    %29 = tpu.matmul %19, %28, %cst_18 {dimension_numbers = #tpu.dot_dimension_numbers<[1], [0], [0], [1], [0, 0, 1, 1], [], []>} : vector<8x32xf32>, vector<32x16xf32>, vector<8x16xf32> -> vector<8x16xf32>
    %c0_19 = arith.constant 0 : index
    %c0_20 = arith.constant 0 : index
    %30 = vector.load %arg8[%c0_19, %c0_20] : memref<32x16xf32, #tpu.memory_space<vmem>>, vector<32x16xf32>
    %cst_21 = arith.constant dense<0.000000e+00> : vector<8x16xf32>
    %31 = tpu.matmul %27, %30, %cst_21 {dimension_numbers = #tpu.dot_dimension_numbers<[1], [0], [0], [1], [0, 0, 1, 1], [], []>} : vector<8x32xf32>, vector<32x16xf32>, vector<8x16xf32> -> vector<8x16xf32>
    %32 = arith.addf %29, %31 : vector<8x16xf32>
    %c0_22 = arith.constant 0 : index
    %c0_23 = arith.constant 0 : index
    %33 = vector.load %arg9[%c0_22, %c0_23] : memref<1x16xf32, #tpu.memory_space<vmem>>, vector<1x16xf32>
    %34 = vector.broadcast %33 : vector<1x16xf32> to vector<8x16xf32>
    %35 = arith.addf %32, %34 : vector<8x16xf32>
    %36 = tpu.iota {dimensions = array<i32: 1>} : vector<8x16xi32>
    %c8_i32 = arith.constant 8 : i32
    %37 = vector.broadcast %c8_i32 : i32 to vector<8x16xi32>
    %38 = arith.cmpi slt, %36, %37 : vector<8x16xi32>
    %39 = math.exp %35 : vector<8x16xf32>
    %40 = arith.select %38, %35, %39 : vector<8x16xi1>, vector<8x16xf32>
    %c0_24 = arith.constant 0 : index
    %c0_25 = arith.constant 0 : index
    %41 = vector.load %arg10[%c0_24, %c0_25] : memref<8x16xf32, #tpu.memory_space<vmem>>, vector<8x16xf32>
    tpu.vector_store %arg10[%c0_24, %c0_25], %40 {strides = array<i32>} : memref<8x16xf32, #tpu.memory_space<vmem>>, vector<8x16xf32>,
    return
  }
  func.func @transform_0(%arg0: i32) -> (i32, i32) {
    %c0_i32 = arith.constant 0 : i32
    %c0_i32_0 = arith.constant 0 : i32
    return %arg0, %c0_i32 : i32, i32
  }
  func.func @transform_1(%arg0: i32) -> (i32, i32) {
    %c0_i32 = arith.constant 0 : i32
    %c0_i32_0 = arith.constant 0 : i32
    return %arg0, %c0_i32 : i32, i32
  }
  func.func @transform_2(%arg0: i32) -> (i32, i32) {
    %c0_i32 = arith.constant 0 : i32
    %c0_i32_0 = arith.constant 0 : i32
    %c0_i32_1 = arith.constant 0 : i32
    return %c0_i32, %c0_i32_0 : i32, i32
  }
  func.func @transform_3(%arg0: i32) -> (i32, i32) {
    %c0_i32 = arith.constant 0 : i32
    %c0_i32_0 = arith.constant 0 : i32
    %c0_i32_1 = arith.constant 0 : i32
    return %c0_i32, %c0_i32_0 : i32, i32
  }
  func.func @transform_4(%arg0: i32) -> (i32, i32) {
    %c0_i32 = arith.constant 0 : i32
    %c0_i32_0 = arith.constant 0 : i32
    %c0_i32_1 = arith.constant 0 : i32
    return %c0_i32, %c0_i32_0 : i32, i32
  }
  func.func @transform_5(%arg0: i32) -> (i32, i32) {
    %c0_i32 = arith.constant 0 : i32
    %c0_i32_0 = arith.constant 0 : i32
    %c0_i32_1 = arith.constant 0 : i32
    return %c0_i32, %c0_i32_0 : i32, i32
  }
  func.func @transform_6(%arg0: i32) -> (i32, i32) {
    %c0_i32 = arith.constant 0 : i32
    %c0_i32_0 = arith.constant 0 : i32
    %c0_i32_1 = arith.constant 0 : i32
    return %c0_i32, %c0_i32_0 : i32, i32
  }
  func.func @transform_7(%arg0: i32) -> (i32, i32) {
    %c0_i32 = arith.constant 0 : i32
    %c0_i32_0 = arith.constant 0 : i32
    %c0_i32_1 = arith.constant 0 : i32
    return %c0_i32, %c0_i32_0 : i32, i32
  }
  func.func @transform_8(%arg0: i32) -> (i32, i32) {
    %c0_i32 = arith.constant 0 : i32
    %c0_i32_0 = arith.constant 0 : i32
    %c0_i32_1 = arith.constant 0 : i32
    return %c0_i32, %c0_i32_0 : i32, i32
  }
  func.func @transform_9(%arg0: i32) -> (i32, i32) {
    %c0_i32 = arith.constant 0 : i32
    %c0_i32_0 = arith.constant 0 : i32
    return %arg0, %c0_i32 : i32, i32
  }
}

</mosaic_0001>

<llo_original>
// kernel: tpu_custom_call.1
$region0: #{tpu_custom_call.1}
  #allocation0 [shape = 'u32[]', space=smem, size = 0x4, offset = 0x4, fixed_abs, tag = 'smem constant byte address 0x4 - core index']
  #allocation1 [shape = 'u32[144,128]{1,0:T(1,128)}', space=vmem, size = 0x12000, scoped, tag = 'internal scratch']
  %s0 = inlined_call_operand.vmem [shape: f32[8,16], index: 0, kind: input, shape index: {}]
  %s1 = inlined_call_operand.vmem [shape: f32[8,12], index: 1, kind: input, shape index: {}]
  %s2 = inlined_call_operand.vmem [shape: f32[16,32], index: 2, kind: input, shape index: {}]
  %s3 = inlined_call_operand.vmem [shape: f32[12,32], index: 3, kind: input, shape index: {}]
  %s4 = inlined_call_operand.vmem [shape: f32[1,32], index: 4, kind: input, shape index: {}]
  %s5 = inlined_call_operand.vmem [shape: f32[1,32], index: 5, kind: input, shape index: {}]
  %s6 = inlined_call_operand.vmem [shape: f32[32,16], index: 6, kind: input, shape index: {}]
  %s7 = inlined_call_operand.vmem [shape: f32[32,16], index: 7, kind: input, shape index: {}]
  %s8 = inlined_call_operand.vmem [shape: f32[1,16], index: 8, kind: input, shape index: {}]
  %s9 = inlined_call_operand.hbm [shape: f32[8,16], index: 9, kind: output, shape index: {}]
  %s10 = sld [smem:[#allocation0]]
  $region46: #{tpu_custom_call.1} parent=0
    _
  %s12 = ssub.s32 1, %s10
  %s13 = scalar_select 0, %s12, %s10
  $region1: #{tpu_custom_call.1} parent=0
    #allocation2 [shape = 'u8[4096]{0}', space=vmem, size = 0x1000, scoped, tag = 'output window, operand 0, single buffered']
    #allocation3 [shape = 's32[1]{0}', space=sflag, size = 0x4, scoped, tag = 'scoped memory for tpu_custom_call.1']
    %14 = vsyncpa [#allocation3], 0
    // Predicated region
    $region2: #{tpu_custom_call.1} parent=1 // pred_check
      _
    $region3: #{tpu_custom_call.1} parent=1 // pred_check_branch
      %16 = sbr.rel (0) target = $region5
    $region4: #{tpu_custom_call.1} parent=1 // pred_region
      _
    $region5: #{tpu_custom_call.1} parent=1 // pred_fallthru
      _
    // Predicated region
    $region6: #{tpu_custom_call.1} parent=1 // pred_check
      _
    $region7: #{tpu_custom_call.1} parent=1 // pred_check_branch
      %18 = sbr.rel (0) target = $region9
    $region8: #{tpu_custom_call.1} parent=1 // pred_region
      _
    $region9: #{tpu_custom_call.1} parent=1 // pred_fallthru
      _
    // Predicated region
    $region10: #{tpu_custom_call.1} parent=1 // pred_check
      _
    $region11: #{tpu_custom_call.1} parent=1 // pred_check_branch
      %20 = sbr.rel (0) target = $region13
    $region12: #{tpu_custom_call.1} parent=1 // pred_region
      _
    $region13: #{tpu_custom_call.1} parent=1 // pred_fallthru
      _
    // Predicated region
    $region14: #{tpu_custom_call.1} parent=1 // pred_check
      _
    $region15: #{tpu_custom_call.1} parent=1 // pred_check_branch
      %22 = sbr.rel (0) target = $region17
    $region16: #{tpu_custom_call.1} parent=1 // pred_region
      _
    $region17: #{tpu_custom_call.1} parent=1 // pred_fallthru
      _
    // Predicated region
    $region18: #{tpu_custom_call.1} parent=1 // pred_check
      _
    $region19: #{tpu_custom_call.1} parent=1 // pred_check_branch
      %24 = sbr.rel (0) target = $region21
    $region20: #{tpu_custom_call.1} parent=1 // pred_region
      _
    $region21: #{tpu_custom_call.1} parent=1 // pred_fallthru
      _
    // Predicated region
    $region22: #{tpu_custom_call.1} parent=1 // pred_check
      _
    $region23: #{tpu_custom_call.1} parent=1 // pred_check_branch
      %26 = sbr.rel (0) target = $region25
    $region24: #{tpu_custom_call.1} parent=1 // pred_region
      _
    $region25: #{tpu_custom_call.1} parent=1 // pred_fallthru
      _
    // Predicated region
    $region26: #{tpu_custom_call.1} parent=1 // pred_check
      _
    $region27: #{tpu_custom_call.1} parent=1 // pred_check_branch
      %28 = sbr.rel (0) target = $region29
    $region28: #{tpu_custom_call.1} parent=1 // pred_region
      _
    $region29: #{tpu_custom_call.1} parent=1 // pred_fallthru
      _
    // Predicated region
    $region30: #{tpu_custom_call.1} parent=1 // pred_check
      _
    $region31: #{tpu_custom_call.1} parent=1 // pred_check_branch
      %30 = sbr.rel (0) target = $region33
    $region32: #{tpu_custom_call.1} parent=1 // pred_region
      _
    $region33: #{tpu_custom_call.1} parent=1 // pred_fallthru
      _
    // Predicated region
    $region34: #{tpu_custom_call.1} parent=1 // pred_check
      _
    $region35: #{tpu_custom_call.1} parent=1 // pred_check_branch
      %32 = sbr.rel (0) target = $region37
    $region36: #{tpu_custom_call.1} parent=1 // pred_region
      _
    $region37: #{tpu_custom_call.1} parent=1 // pred_fallthru
      _
    %v33 = vld [vmem:[%s0] sm:$0xff]
    %v34 = vld [vmem:[%s2] sm:$0xff]
    %v35 = vld [vmem:[%s2 + $0x8] sm:$0xff]
    %v36 = vld [vmem:[%s4] sm:$0x1]
    %v38 = vlaneseq
    %v39 = vshrl.u32 %v38, 7
    %v40 = vsub.s32 0, %v39
    %v41 = vrot.slane %v36, %v40
    %vm43 = vcmask 130048
    %v45 = vsel %vm43, %v33, 0
    %47 = vmatprep.subr.mxu0 0.0
    %48 = vmatpush1.msra.mxu0 0.0
    %49 = vmatprep.subr.mxu0 0.0
    %50 = vmatpush1.msra.mxu0 0.0
    %51 = vmatprep.subr.mxu0 0.0
    %52 = vmatpush1.msra.mxu0 0.0
    %53 = vmatprep.subr.mxu0 0.0
    %54 = vmatpush1.msra.mxu0 0.0
    %55 = vmatprep.subr.mxu0 0.0
    %56 = vmatpush1.msra.mxu0 0.0
    %57 = vmatprep.subr.mxu0 0.0
    %58 = vmatpush1.msra.mxu0 0.0
    %59 = vmatprep.subr.mxu0 0.0
    %60 = vmatpush1.msra.mxu0 0.0
    %61 = vmatprep.subr.mxu0 0.0
    %62 = vmatpush1.msra.mxu0 0.0
    %63 = vmatprep.subr.mxu0 0.0
    %64 = vmatpush1.msra.mxu0 0.0
    %65 = vmatprep.subr.mxu0 0.0
    %66 = vmatpush1.msra.mxu0 0.0
    %67 = vmatprep.subr.mxu0 0.0
    %68 = vmatpush1.msra.mxu0 0.0
    %69 = vmatprep.subr.mxu0 0.0
    %70 = vmatpush1.msra.mxu0 0.0
    %71 = vmatprep.subr.mxu0 0.0
    %72 = vmatpush1.msra.mxu0 0.0
    %73 = vmatprep.subr.mxu0 0.0
    %74 = vmatpush1.msra.mxu0 0.0
    %75 = vmatprep.subr.mxu0 0.0
    %76 = vmatpush1.msra.mxu0 %v35
    %77 = vmatprep.subr.mxu0 0.0
    %78 = vmatpush1.msra.mxu0 %v34
    %79 = vmatprep.subr.mxu0 0.0
    %80 = vmatpush2.msra.mxu0 0.0
    %81 = vmatprep.subr.mxu0 0.0
    %82 = vmatpush2.msra.mxu0 0.0
    %83 = vmatprep.subr.mxu0 0.0
    %84 = vmatpush2.msra.mxu0 0.0
    %85 = vmatprep.subr.mxu0 0.0
    %86 = vmatpush2.msra.mxu0 0.0
    %87 = vmatprep.subr.mxu0 0.0
    %88 = vmatpush2.msra.mxu0 0.0
    %89 = vmatprep.subr.mxu0 0.0
    %90 = vmatpush2.msra.mxu0 0.0
    %91 = vmatprep.subr.mxu0 0.0
    %92 = vmatpush2.msra.mxu0 0.0
    %93 = vmatprep.subr.mxu0 0.0
    %94 = vmatpush2.msra.mxu0 0.0
    %95 = vmatprep.subr.mxu0 0.0
    %96 = vmatpush2.msra.mxu0 0.0
    %97 = vmatprep.subr.mxu0 0.0
    %98 = vmatpush2.msra.mxu0 0.0
    %99 = vmatprep.subr.mxu0 0.0
    %100 = vmatpush2.msra.mxu0 0.0
    %101 = vmatprep.subr.mxu0 0.0
    %102 = vmatpush2.msra.mxu0 0.0
    %103 = vmatprep.subr.mxu0 0.0
    %104 = vmatpush2.msra.mxu0 0.0
    %105 = vmatprep.subr.mxu0 0.0
    %106 = vmatpush2.msra.mxu0 0.0
    %107 = vmatprep.subr.mxu0 0.0
    %108 = vmatpush2.msra.mxu0 0.0
    %109 = vmatprep.subr.mxu0 0.0
    %110 = vmatpush2.msra.mxu0 0.0
    %111 = vmatprep.mubr.f32.mxu0 0.0
    %112 = vmatmul.mubr.f32.gmra.mxu0 %v45
    %v113 = vpop.f32.mrf.mxu0
    %v114 = vadd.f32 %v41, %v113
    %v115 = vpop.f32.mrf.mxu0
    %116 = vdwg.mxu0
    %v117 = vld [vmem:[%s1] sm:$0xff]
    %v118 = vld [vmem:[%s3] sm:$0xff]
    %v119 = vld [vmem:[%s3 + $0x8] sm:$0xf]
    %v120 = vld [vmem:[%s5] sm:$0x1]
    %v122 = vlaneseq
    %v123 = vshrl.u32 %v122, 7
    %v124 = vsub.s32 0, %v123
    %v125 = vrot.slane %v120, %v124
    %vm127 = vcmask 97280
    %v129 = vsel %vm127, %v117, 0
    %vm131 = vcmask 1043456
    %v133 = vsel %vm131, %v119, 0
    %135 = vmatprep.subr.mxu0 0.0
    %136 = vmatpush1.msra.mxu0 0.0
    %137 = vmatprep.subr.mxu0 0.0
    %138 = vmatpush1.msra.mxu0 0.0
    %139 = vmatprep.subr.mxu0 0.0
    %140 = vmatpush1.msra.mxu0 0.0
    %141 = vmatprep.subr.mxu0 0.0
    %142 = vmatpush1.msra.mxu0 0.0
    %143 = vmatprep.subr.mxu0 0.0
    %144 = vmatpush1.msra.mxu0 0.0
    %145 = vmatprep.subr.mxu0 0.0
    %146 = vmatpush1.msra.mxu0 0.0
    %147 = vmatprep.subr.mxu0 0.0
    %148 = vmatpush1.msra.mxu0 0.0
    %149 = vmatprep.subr.mxu0 0.0
    %150 = vmatpush1.msra.mxu0 0.0
    %151 = vmatprep.subr.mxu0 0.0
    %152 = vmatpush1.msra.mxu0 0.0
    %153 = vmatprep.subr.mxu0 0.0
    %154 = vmatpush1.msra.mxu0 0.0
    %155 = vmatprep.subr.mxu0 0.0
    %156 = vmatpush1.msra.mxu0 0.0
    %157 = vmatprep.subr.mxu0 0.0
    %158 = vmatpush1.msra.mxu0 0.0
    %159 = vmatprep.subr.mxu0 0.0
    %160 = vmatpush1.msra.mxu0 0.0
    %161 = vmatprep.subr.mxu0 0.0
    %162 = vmatpush1.msra.mxu0 0.0
    %163 = vmatprep.subr.mxu0 0.0
    %164 = vmatpush1.msra.mxu0 %v133
    %165 = vmatprep.subr.mxu0 0.0
    %166 = vmatpush1.msra.mxu0 %v118
    %167 = vmatprep.subr.mxu0 0.0
    %168 = vmatpush2.msra.mxu0 0.0
    %169 = vmatprep.subr.mxu0 0.0
    %170 = vmatpush2.msra.mxu0 0.0
    %171 = vmatprep.subr.mxu0 0.0
    %172 = vmatpush2.msra.mxu0 0.0
    %173 = vmatprep.subr.mxu0 0.0
    %174 = vmatpush2.msra.mxu0 0.0
    %175 = vmatprep.subr.mxu0 0.0
    %176 = vmatpush2.msra.mxu0 0.0
    %177 = vmatprep.subr.mxu0 0.0
    %178 = vmatpush2.msra.mxu0 0.0
    %179 = vmatprep.subr.mxu0 0.0
    %180 = vmatpush2.msra.mxu0 0.0
    %181 = vmatprep.subr.mxu0 0.0
    %182 = vmatpush2.msra.mxu0 0.0
    %183 = vmatprep.subr.mxu0 0.0
    %184 = vmatpush2.msra.mxu0 0.0
    %185 = vmatprep.subr.mxu0 0.0
    %186 = vmatpush2.msra.mxu0 0.0
    %187 = vmatprep.subr.mxu0 0.0
    %188 = vmatpush2.msra.mxu0 0.0
    %189 = vmatprep.subr.mxu0 0.0
    %190 = vmatpush2.msra.mxu0 0.0
    %191 = vmatprep.subr.mxu0 0.0
    %192 = vmatpush2.msra.mxu0 0.0
    %193 = vmatprep.subr.mxu0 0.0
    %194 = vmatpush2.msra.mxu0 0.0
    %195 = vmatprep.subr.mxu0 0.0
    %196 = vmatpush2.msra.mxu0 0.0
    %197 = vmatprep.subr.mxu0 0.0
    %198 = vmatpush2.msra.mxu0 0.0
    %199 = vmatprep.mubr.f32.mxu0 0.0
    %200 = vmatmul.mubr.f32.gmra.mxu0 %v129
    %v201 = vpop.f32.mrf.mxu0
    %v202 = vadd.f32 %v125, %v201
    %v203 = vpop.f32.mrf.mxu0
    %204 = vdwg.mxu0
    %v205 = vmax.f32 %v114, 0.0
    %v206 = vand.u32 2147483647, %v114
    %v207 = vsub.f32 0.0, %v206
    %v208 = vmul.f32 %v207, 1.442695
    %v209 = vpow.pop %v208
    %v210 = vadd.f32 %v209, 1.0
    %v211 = vlog2.pop %v210
    %v212 = vmul.f32 %v211, 0.6931472
    %v213 = vmul.f32 -0.5, %v209
    %v214 = vadd.f32 %v213, 1.0
    %v215 = vmul.f32 %v214, %v209
    %v216 = vand.u32 2147483647, %v209
    %vm217 = vcmp.lt.f32.partialorder %v216, 0.0004427343
    %v218 = vsel %vm217, %v215, %v212
    %v219 = vadd.f32 %v205, %v218
    %v220 = vmax.f32 %v202, 0.0
    %v221 = vand.u32 2147483647, %v202
    %v222 = vsub.f32 0.0, %v221
    %v223 = vmul.f32 %v222, 1.442695
    %v224 = vpow.pop %v223
    %v225 = vadd.f32 %v224, 1.0
    %v226 = vlog2.pop %v225
    %v227 = vmul.f32 %v226, 0.6931472
    %v228 = vmul.f32 -0.5, %v224
    %v229 = vadd.f32 %v228, 1.0
    %v230 = vmul.f32 %v229, %v224
    %v231 = vand.u32 2147483647, %v224
    %vm232 = vcmp.lt.f32.partialorder %v231, 0.0004427343
    %v233 = vsel %vm232, %v230, %v227
    %v234 = vadd.f32 %v220, %v233
    %v235 = vld [vmem:[%s6] sm:$0xff]
    %v236 = vld [vmem:[%s6 + $0x8] sm:$0xff]
    %v237 = vld [vmem:[%s6 + $0x10] sm:$0xff]
    %v238 = vld [vmem:[%s6 + $0x18] sm:$0xff]
    %v239 = vld [vmem:[%s7] sm:$0xff]
    %v240 = vld [vmem:[%s7 + $0x8] sm:$0xff]
    %v241 = vld [vmem:[%s7 + $0x10] sm:$0xff]
    %v242 = vld [vmem:[%s7 + $0x18] sm:$0xff]
    %vm243 = vcmask 261120
    %v245 = vsel %vm243, %v234, 0
    %247 = vmatprep.subr.mxu0 0.0
    %248 = vmatpush1.msra.mxu0 0.0
    %249 = vmatprep.subr.mxu0 0.0
    %250 = vmatpush1.msra.mxu0 0.0
    %251 = vmatprep.subr.mxu0 0.0
    %252 = vmatpush1.msra.mxu0 0.0
    %253 = vmatprep.subr.mxu0 0.0
    %254 = vmatpush1.msra.mxu0 0.0
    %255 = vmatprep.subr.mxu0 0.0
    %256 = vmatpush1.msra.mxu0 0.0
    %257 = vmatprep.subr.mxu0 0.0
    %258 = vmatpush1.msra.mxu0 0.0
    %259 = vmatprep.subr.mxu0 0.0
    %260 = vmatpush1.msra.mxu0 0.0
    %261 = vmatprep.subr.mxu0 0.0
    %262 = vmatpush1.msra.mxu0 0.0
    %263 = vmatprep.subr.mxu0 0.0
    %264 = vmatpush1.msra.mxu0 0.0
    %265 = vmatprep.subr.mxu0 0.0
    %266 = vmatpush1.msra.mxu0 0.0
    %267 = vmatprep.subr.mxu0 0.0
    %268 = vmatpush1.msra.mxu0 0.0
    %269 = vmatprep.subr.mxu0 0.0
    %270 = vmatpush1.msra.mxu0 0.0
    %271 = vmatprep.subr.mxu0 0.0
    %272 = vmatpush1.msra.mxu0 %v242
    %273 = vmatprep.subr.mxu0 0.0
    %274 = vmatpush1.msra.mxu0 %v241
    %275 = vmatprep.subr.mxu0 0.0
    %276 = vmatpush1.msra.mxu0 %v240
    %277 = vmatprep.subr.mxu0 0.0
    %278 = vmatpush1.msra.mxu0 %v239
    %279 = vmatprep.subr.mxu0 0.0
    %280 = vmatpush2.msra.mxu0 0.0
    %281 = vmatprep.subr.mxu0 0.0
    %282 = vmatpush2.msra.mxu0 0.0
    %283 = vmatprep.subr.mxu0 0.0
    %284 = vmatpush2.msra.mxu0 0.0
    %285 = vmatprep.subr.mxu0 0.0
    %286 = vmatpush2.msra.mxu0 0.0
    %287 = vmatprep.subr.mxu0 0.0
    %288 = vmatpush2.msra.mxu0 0.0
    %289 = vmatprep.subr.mxu0 0.0
    %290 = vmatpush2.msra.mxu0 0.0
    %291 = vmatprep.subr.mxu0 0.0
    %292 = vmatpush2.msra.mxu0 0.0
    %293 = vmatprep.subr.mxu0 0.0
    %294 = vmatpush2.msra.mxu0 0.0
    %295 = vmatprep.subr.mxu0 0.0
    %296 = vmatpush2.msra.mxu0 0.0
    %297 = vmatprep.subr.mxu0 0.0
    %298 = vmatpush2.msra.mxu0 0.0
    %299 = vmatprep.subr.mxu0 0.0
    %300 = vmatpush2.msra.mxu0 0.0
    %301 = vmatprep.subr.mxu0 0.0
    %302 = vmatpush2.msra.mxu0 0.0
    %303 = vmatprep.subr.mxu0 0.0
    %304 = vmatpush2.msra.mxu0 0.0
    %305 = vmatprep.subr.mxu0 0.0
    %306 = vmatpush2.msra.mxu0 0.0
    %307 = vmatprep.subr.mxu0 0.0
    %308 = vmatpush2.msra.mxu0 0.0
    %309 = vmatprep.subr.mxu0 0.0
    %310 = vmatpush2.msra.mxu0 0.0
    %311 = vmatprep.mubr.f32.mxu0 0.0
    %312 = vmatmul.mubr.f32.gmra.mxu0 %v245
    %v313 = vpop.f32.mrf.mxu0
    %v314 = vadd.f32 0.0, %v313
    %v315 = vpop.f32.mrf.mxu0
    %316 = vdwg.mxu0
    %v318 = vsel %vm243, %v219, 0
    %320 = vmatprep.subr.mxu0 0.0
    %321 = vmatpush1.msra.mxu0 0.0
    %322 = vmatprep.subr.mxu0 0.0
    %323 = vmatpush1.msra.mxu0 0.0
    %324 = vmatprep.subr.mxu0 0.0
    %325 = vmatpush1.msra.mxu0 0.0
    %326 = vmatprep.subr.mxu0 0.0
    %327 = vmatpush1.msra.mxu0 0.0
    %328 = vmatprep.subr.mxu0 0.0
    %329 = vmatpush1.msra.mxu0 0.0
    %330 = vmatprep.subr.mxu0 0.0
    %331 = vmatpush1.msra.mxu0 0.0
    %332 = vmatprep.subr.mxu0 0.0
    %333 = vmatpush1.msra.mxu0 0.0
    %334 = vmatprep.subr.mxu0 0.0
    %335 = vmatpush1.msra.mxu0 0.0
    %336 = vmatprep.subr.mxu0 0.0
    %337 = vmatpush1.msra.mxu0 0.0
    %338 = vmatprep.subr.mxu0 0.0
    %339 = vmatpush1.msra.mxu0 0.0
    %340 = vmatprep.subr.mxu0 0.0
    %341 = vmatpush1.msra.mxu0 0.0
    %342 = vmatprep.subr.mxu0 0.0
    %343 = vmatpush1.msra.mxu0 0.0
    %344 = vmatprep.subr.mxu0 0.0
    %345 = vmatpush1.msra.mxu0 %v238
    %346 = vmatprep.subr.mxu0 0.0
    %347 = vmatpush1.msra.mxu0 %v237
    %348 = vmatprep.subr.mxu0 0.0
    %349 = vmatpush1.msra.mxu0 %v236
    %350 = vmatprep.subr.mxu0 0.0
    %351 = vmatpush1.msra.mxu0 %v235
    %352 = vmatprep.subr.mxu0 0.0
    %353 = vmatpush2.msra.mxu0 0.0
    %354 = vmatprep.subr.mxu0 0.0
    %355 = vmatpush2.msra.mxu0 0.0
    %356 = vmatprep.subr.mxu0 0.0
    %357 = vmatpush2.msra.mxu0 0.0
    %358 = vmatprep.subr.mxu0 0.0
    %359 = vmatpush2.msra.mxu0 0.0
    %360 = vmatprep.subr.mxu0 0.0
    %361 = vmatpush2.msra.mxu0 0.0
    %362 = vmatprep.subr.mxu0 0.0
    %363 = vmatpush2.msra.mxu0 0.0
    %364 = vmatprep.subr.mxu0 0.0
    %365 = vmatpush2.msra.mxu0 0.0
    %366 = vmatprep.subr.mxu0 0.0
    %367 = vmatpush2.msra.mxu0 0.0
    %368 = vmatprep.subr.mxu0 0.0
    %369 = vmatpush2.msra.mxu0 0.0
    %370 = vmatprep.subr.mxu0 0.0
    %371 = vmatpush2.msra.mxu0 0.0
    %372 = vmatprep.subr.mxu0 0.0
    %373 = vmatpush2.msra.mxu0 0.0
    %374 = vmatprep.subr.mxu0 0.0
    %375 = vmatpush2.msra.mxu0 0.0
    %376 = vmatprep.subr.mxu0 0.0
    %377 = vmatpush2.msra.mxu0 0.0
    %378 = vmatprep.subr.mxu0 0.0
    %379 = vmatpush2.msra.mxu0 0.0
    %380 = vmatprep.subr.mxu0 0.0
    %381 = vmatpush2.msra.mxu0 0.0
    %382 = vmatprep.subr.mxu0 0.0
    %383 = vmatpush2.msra.mxu0 0.0
    %384 = vmatprep.mubr.f32.mxu0 0.0
    %385 = vmatmul.mubr.f32.gmra.mxu0 %v318
    %v386 = vpop.f32.mrf.mxu0
    %v387 = vadd.f32 %v314, %v386
    %v388 = vpop.f32.mrf.mxu0
    %389 = vdwg.mxu0
    %v390 = vld [vmem:[%s8] sm:$0x1]
    %v392 = vlaneseq
    %v393 = vshrl.u32 %v392, 7
    %v394 = vsub.s32 0, %v393
    %v395 = vrot.slane %v390, %v394
    %v397 = vadd.f32 %v387, %v395
    %v398 = vlaneseq
    %v399 = vand.u32 %v398, 127
    %vm400 = vcmp.lt.s32.totalorder %v399, 8
    %v401 = vmul.f32 %v397, 1.442695
    %v402 = vpow.pop %v401
    %v403 = vsel %vm400, %v397, %v402
    %404 = vst.msk [vmem:[#allocation2] sm:$0xff] %vm43, %v403
    // Predicated region
    $region38: #{tpu_custom_call.1} parent=1 // pred_check
      _
    $region39: #{tpu_custom_call.1} parent=1 // pred_check_branch
      %406 = sbr.rel (0) target = $region41
    $region40: #{tpu_custom_call.1} parent=1 // pred_region
      %s408 = ssub.s32 128, 128
      %409 = vsyncadd [#allocation3], %s408
      %s411 = sshll.u32 [#allocation2], 4
      %s412 = int_to_ptr.vmem [resolvable:$true] %s411
      %414 = dma.vmem_to_hbm [thread:$0]  %s412, 128, %s9, [#allocation3]
    $region41: #{tpu_custom_call.1} parent=1 // pred_fallthru
      _
    // Predicated region
    $region42: #{tpu_custom_call.1} parent=1 // pred_check
      _
    $region43: #{tpu_custom_call.1} parent=1 // pred_check_branch
      %416 = sbr.rel (0) target = $region45
    $region44: #{tpu_custom_call.1} parent=1 // pred_region
      %417 = dma.done [#allocation3], 128
    $region45: #{tpu_custom_call.1} parent=1 // pred_fallthru
      _
    %418 = vsyncpa [#allocation3], 1

// kernel: tpu_custom_call.1
$region0: #{tpu_custom_call.1}
  #allocation0 [shape = 'u32[]', space=smem, size = 0x4, offset = 0x4, fixed_abs, tag = 'smem constant byte address 0x4 - core index']
  #allocation1 [shape = 'u32[144,128]{1,0:T(1,128)}', space=vmem, size = 0x12000, scoped, tag = 'internal scratch']
  %s0 = inlined_call_operand.vmem [shape: f32[8,16], index: 0, kind: input, shape index: {}]
  %s1 = inlined_call_operand.vmem [shape: f32[8,12], index: 1, kind: input, shape index: {}]
  %s2 = inlined_call_operand.vmem [shape: f32[16,32], index: 2, kind: input, shape index: {}]
  %s3 = inlined_call_operand.vmem [shape: f32[12,32], index: 3, kind: input, shape index: {}]
  %s4 = inlined_call_operand.vmem [shape: f32[1,32], index: 4, kind: input, shape index: {}]
  %s5 = inlined_call_operand.vmem [shape: f32[1,32], index: 5, kind: input, shape index: {}]
  %s6 = inlined_call_operand.vmem [shape: f32[32,16], index: 6, kind: input, shape index: {}]
  %s7 = inlined_call_operand.vmem [shape: f32[32,16], index: 7, kind: input, shape index: {}]
  %s8 = inlined_call_operand.vmem [shape: f32[1,16], index: 8, kind: input, shape index: {}]
  %s9 = inlined_call_operand.hbm [shape: f32[8,16], index: 9, kind: output, shape index: {}]
  %s10 = sld [smem:[#allocation0]]
  $region46: #{tpu_custom_call.1} parent=0
    _
  %s12 = ssub.s32 1, %s10
  %s13 = scalar_select 0, %s12, %s10
  $region1: #{tpu_custom_call.1} parent=0
    #allocation2 [shape = 'u8[4096]{0}', space=vmem, size = 0x1000, scoped, tag = 'output window, operand 0, single buffered']
    #allocation3 [shape = 's32[1]{0}', space=sflag, size = 0x4, scoped, tag = 'scoped memory for tpu_custom_call.1']
    %14 = vsyncpa [#allocation3], 0
    // Predicated region
    $region2: #{tpu_custom_call.1} parent=1 // pred_check
      _
    $region3: #{tpu_custom_call.1} parent=1 // pred_check_branch
      %16 = sbr.rel (0) target = $region5
    $region4: #{tpu_custom_call.1} parent=1 // pred_region
      _
    $region5: #{tpu_custom_call.1} parent=1 // pred_fallthru
      _
    // Predicated region
    $region6: #{tpu_custom_call.1} parent=1 // pred_check
      _
    $region7: #{tpu_custom_call.1} parent=1 // pred_check_branch
      %18 = sbr.rel (0) target = $region9
    $region8: #{tpu_custom_call.1} parent=1 // pred_region
      _
    $region9: #{tpu_custom_call.1} parent=1 // pred_fallthru
      _
    // Predicated region
    $region10: #{tpu_custom_call.1} parent=1 // pred_check
      _
    $region11: #{tpu_custom_call.1} parent=1 // pred_check_branch
      %20 = sbr.rel (0) target = $region13
    $region12: #{tpu_custom_call.1} parent=1 // pred_region
      _
    $region13: #{tpu_custom_call.1} parent=1 // pred_fallthru
      _
    // Predicated region
    $region14: #{tpu_custom_call.1} parent=1 // pred_check
      _
    $region15: #{tpu_custom_call.1} parent=1 // pred_check_branch
      %22 = sbr.rel (0) target = $region17
    $region16: #{tpu_custom_call.1} parent=1 // pred_region
      _
    $region17: #{tpu_custom_call.1} parent=1 // pred_fallthru
      _
    // Predicated region
    $region18: #{tpu_custom_call.1} parent=1 // pred_check
      _
    $region19: #{tpu_custom_call.1} parent=1 // pred_check_branch
      %24 = sbr.rel (0) target = $region21
    $region20: #{tpu_custom_call.1} parent=1 // pred_region
      _
    $region21: #{tpu_custom_call.1} parent=1 // pred_fallthru
      _
    // Predicated region
    $region22: #{tpu_custom_call.1} parent=1 // pred_check
      _
    $region23: #{tpu_custom_call.1} parent=1 // pred_check_branch
      %26 = sbr.rel (0) target = $region25
    $region24: #{tpu_custom_call.1} parent=1 // pred_region
      _
    $region25: #{tpu_custom_call.1} parent=1 // pred_fallthru
      _
    // Predicated region
    $region26: #{tpu_custom_call.1} parent=1 // pred_check
      _
    $region27: #{tpu_custom_call.1} parent=1 // pred_check_branch
      %28 = sbr.rel (0) target = $region29
    $region28: #{tpu_custom_call.1} parent=1 // pred_region
      _
    $region29: #{tpu_custom_call.1} parent=1 // pred_fallthru
      _
    // Predicated region
    $region30: #{tpu_custom_call.1} parent=1 // pred_check
      _
    $region31: #{tpu_custom_call.1} parent=1 // pred_check_branch
      %30 = sbr.rel (0) target = $region33
    $region32: #{tpu_custom_call.1} parent=1 // pred_region
      _
    $region33: #{tpu_custom_call.1} parent=1 // pred_fallthru
      _
    // Predicated region
    $region34: #{tpu_custom_call.1} parent=1 // pred_check
      _
    $region35: #{tpu_custom_call.1} parent=1 // pred_check_branch
      %32 = sbr.rel (0) target = $region37
    $region36: #{tpu_custom_call.1} parent=1 // pred_region
      _
    $region37: #{tpu_custom_call.1} parent=1 // pred_fallthru
      _
    %v33 = vld [vmem:[%s0] sm:$0xff]
    %v34 = vld [vmem:[%s2] sm:$0xff]
    %v35 = vld [vmem:[%s2 + $0x8] sm:$0xff]
    %v36 = vld [vmem:[%s4] sm:$0x1]
    %v38 = vlaneseq
    %v39 = vshrl.u32 %v38, 7
    %v40 = vsub.s32 0, %v39
    %v41 = vrot.slane %v36, %v40
    %vm43 = vcmask 130048
    %v45 = vsel %vm43, %v33, 0
    %47 = vmatprep.subr.mxu0 0.0
    %48 = vmatpush1.msra.mxu0 0.0
    %49 = vmatprep.subr.mxu0 0.0
    %50 = vmatpush1.msra.mxu0 0.0
    %51 = vmatprep.subr.mxu0 0.0
    %52 = vmatpush1.msra.mxu0 0.0
    %53 = vmatprep.subr.mxu0 0.0
    %54 = vmatpush1.msra.mxu0 0.0
    %55 = vmatprep.subr.mxu0 0.0
    %56 = vmatpush1.msra.mxu0 0.0
    %57 = vmatprep.subr.mxu0 0.0
    %58 = vmatpush1.msra.mxu0 0.0
    %59 = vmatprep.subr.mxu0 0.0
    %60 = vmatpush1.msra.mxu0 0.0
    %61 = vmatprep.subr.mxu0 0.0
    %62 = vmatpush1.msra.mxu0 0.0
    %63 = vmatprep.subr.mxu0 0.0
    %64 = vmatpush1.msra.mxu0 0.0
    %65 = vmatprep.subr.mxu0 0.0
    %66 = vmatpush1.msra.mxu0 0.0
    %67 = vmatprep.subr.mxu0 0.0
    %68 = vmatpush1.msra.mxu0 0.0
    %69 = vmatprep.subr.mxu0 0.0
    %70 = vmatpush1.msra.mxu0 0.0
    %71 = vmatprep.subr.mxu0 0.0
    %72 = vmatpush1.msra.mxu0 0.0
    %73 = vmatprep.subr.mxu0 0.0
    %74 = vmatpush1.msra.mxu0 0.0
    %75 = vmatprep.subr.mxu0 0.0
    %76 = vmatpush1.msra.mxu0 %v35
    %77 = vmatprep.subr.mxu0 0.0
    %78 = vmatpush1.msra.mxu0 %v34
    %79 = vmatprep.subr.mxu0 0.0
    %80 = vmatpush2.msra.mxu0 0.0
    %81 = vmatprep.subr.mxu0 0.0
    %82 = vmatpush2.msra.mxu0 0.0
    %83 = vmatprep.subr.mxu0 0.0
    %84 = vmatpush2.msra.mxu0 0.0
    %85 = vmatprep.subr.mxu0 0.0
    %86 = vmatpush2.msra.mxu0 0.0
    %87 = vmatprep.subr.mxu0 0.0
    %88 = vmatpush2.msra.mxu0 0.0
    %89 = vmatprep.subr.mxu0 0.0
    %90 = vmatpush2.msra.mxu0 0.0
    %91 = vmatprep.subr.mxu0 0.0
    %92 = vmatpush2.msra.mxu0 0.0
    %93 = vmatprep.subr.mxu0 0.0
    %94 = vmatpush2.msra.mxu0 0.0
    %95 = vmatprep.subr.mxu0 0.0
    %96 = vmatpush2.msra.mxu0 0.0
    %97 = vmatprep.subr.mxu0 0.0
    %98 = vmatpush2.msra.mxu0 0.0
    %99 = vmatprep.subr.mxu0 0.0
    %100 = vmatpush2.msra.mxu0 0.0
    %101 = vmatprep.subr.mxu0 0.0
    %102 = vmatpush2.msra.mxu0 0.0
    %103 = vmatprep.subr.mxu0 0.0
    %104 = vmatpush2.msra.mxu0 0.0
    %105 = vmatprep.subr.mxu0 0.0
    %106 = vmatpush2.msra.mxu0 0.0
    %107 = vmatprep.subr.mxu0 0.0
    %108 = vmatpush2.msra.mxu0 0.0
    %109 = vmatprep.subr.mxu0 0.0
    %110 = vmatpush2.msra.mxu0 0.0
    %111 = vmatprep.mubr.f32.mxu0 0.0
    %112 = vmatmul.mubr.f32.gmra.mxu0 %v45
    %v113 = vpop.f32.mrf.mxu0
    %v114 = vadd.f32 %v41, %v113
    %v115 = vpop.f32.mrf.mxu0
    %116 = vdwg.mxu0
    %v117 = vld [vmem:[%s1] sm:$0xff]
    %v118 = vld [vmem:[%s3] sm:$0xff]
    %v119 = vld [vmem:[%s3 + $0x8] sm:$0xf]
    %v120 = vld [vmem:[%s5] sm:$0x1]
    %v122 = vlaneseq
    %v123 = vshrl.u32 %v122, 7
    %v124 = vsub.s32 0, %v123
    %v125 = vrot.slane %v120, %v124
    %vm127 = vcmask 97280
    %v129 = vsel %vm127, %v117, 0
    %vm131 = vcmask 1043456
    %v133 = vsel %vm131, %v119, 0
    %135 = vmatprep.subr.mxu0 0.0
    %136 = vmatpush1.msra.mxu0 0.0
    %137 = vmatprep.subr.mxu0 0.0
    %138 = vmatpush1.msra.mxu0 0.0
    %139 = vmatprep.subr.mxu0 0.0
    %140 = vmatpush1.msra.mxu0 0.0
    %141 = vmatprep.subr.mxu0 0.0
    %142 = vmatpush1.msra.mxu0 0.0
    %143 = vmatprep.subr.mxu0 0.0
    %144 = vmatpush1.msra.mxu0 0.0
    %145 = vmatprep.subr.mxu0 0.0
    %146 = vmatpush1.msra.mxu0 0.0
    %147 = vmatprep.subr.mxu0 0.0
    %148 = vmatpush1.msra.mxu0 0.0
    %149 = vmatprep.subr.mxu0 0.0
    %150 = vmatpush1.msra.mxu0 0.0
    %151 = vmatprep.subr.mxu0 0.0
    %152 = vmatpush1.msra.mxu0 0.0
    %153 = vmatprep.subr.mxu0 0.0
    %154 = vmatpush1.msra.mxu0 0.0
    %155 = vmatprep.subr.mxu0 0.0
    %156 = vmatpush1.msra.mxu0 0.0
    %157 = vmatprep.subr.mxu0 0.0
    %158 = vmatpush1.msra.mxu0 0.0
    %159 = vmatprep.subr.mxu0 0.0
    %160 = vmatpush1.msra.mxu0 0.0
    %161 = vmatprep.subr.mxu0 0.0
    %162 = vmatpush1.msra.mxu0 0.0
    %163 = vmatprep.subr.mxu0 0.0
    %164 = vmatpush1.msra.mxu0 %v133
    %165 = vmatprep.subr.mxu0 0.0
    %166 = vmatpush1.msra.mxu0 %v118
    %167 = vmatprep.subr.mxu0 0.0
    %168 = vmatpush2.msra.mxu0 0.0
    %169 = vmatprep.subr.mxu0 0.0
    %170 = vmatpush2.msra.mxu0 0.0
    %171 = vmatprep.subr.mxu0 0.0
    %172 = vmatpush2.msra.mxu0 0.0
    %173 = vmatprep.subr.mxu0 0.0
    %174 = vmatpush2.msra.mxu0 0.0
    %175 = vmatprep.subr.mxu0 0.0
    %176 = vmatpush2.msra.mxu0 0.0
    %177 = vmatprep.subr.mxu0 0.0
    %178 = vmatpush2.msra.mxu0 0.0
    %179 = vmatprep.subr.mxu0 0.0
    %180 = vmatpush2.msra.mxu0 0.0
    %181 = vmatprep.subr.mxu0 0.0
    %182 = vmatpush2.msra.mxu0 0.0
    %183 = vmatprep.subr.mxu0 0.0
    %184 = vmatpush2.msra.mxu0 0.0
    %185 = vmatprep.subr.mxu0 0.0
    %186 = vmatpush2.msra.mxu0 0.0
    %187 = vmatprep.subr.mxu0 0.0
    %188 = vmatpush2.msra.mxu0 0.0
    %189 = vmatprep.subr.mxu0 0.0
    %190 = vmatpush2.msra.mxu0 0.0
    %191 = vmatprep.subr.mxu0 0.0
    %192 = vmatpush2.msra.mxu0 0.0
    %193 = vmatprep.subr.mxu0 0.0
    %194 = vmatpush2.msra.mxu0 0.0
    %195 = vmatprep.subr.mxu0 0.0
    %196 = vmatpush2.msra.mxu0 0.0
    %197 = vmatprep.subr.mxu0 0.0
    %198 = vmatpush2.msra.mxu0 0.0
    %199 = vmatprep.mubr.f32.mxu0 0.0
    %200 = vmatmul.mubr.f32.gmra.mxu0 %v129
    %v201 = vpop.f32.mrf.mxu0
    %v202 = vadd.f32 %v125, %v201
    %v203 = vpop.f32.mrf.mxu0
    %204 = vdwg.mxu0
    %v205 = vmax.f32 %v114, 0.0
    %v206 = vand.u32 2147483647, %v114
    %v207 = vsub.f32 0.0, %v206
    %v208 = vmul.f32 %v207, 1.442695
    %v209 = vpow.pop %v208
    %v210 = vadd.f32 %v209, 1.0
    %v211 = vlog2.pop %v210
    %v212 = vmul.f32 %v211, 0.6931472
    %v213 = vmul.f32 -0.5, %v209
    %v214 = vadd.f32 %v213, 1.0
    %v215 = vmul.f32 %v214, %v209
    %v216 = vand.u32 2147483647, %v209
    %vm217 = vcmp.lt.f32.partialorder %v216, 0.0004427343
    %v218 = vsel %vm217, %v215, %v212
    %v219 = vadd.f32 %v205, %v218
    %v220 = vmax.f32 %v202, 0.0
    %v221 = vand.u32 2147483647, %v202
    %v222 = vsub.f32 0.0, %v221
    %v223 = vmul.f32 %v222, 1.442695
    %v224 = vpow.pop %v223
    %v225 = vadd.f32 %v224, 1.0
    %v226 = vlog2.pop %v225
    %v227 = vmul.f32 %v226, 0.6931472
    %v228 = vmul.f32 -0.5, %v224
    %v229 = vadd.f32 %v228, 1.0
    %v230 = vmul.f32 %v229, %v224
    %v231 = vand.u32 2147483647, %v224
    %vm232 = vcmp.lt.f32.partialorder %v231, 0.0004427343
    %v233 = vsel %vm232, %v230, %v227
    %v234 = vadd.f32 %v220, %v233
    %v235 = vld [vmem:[%s6] sm:$0xff]
    %v236 = vld [vmem:[%s6 + $0x8] sm:$0xff]
    %v237 = vld [vmem:[%s6 + $0x10] sm:$0xff]
    %v238 = vld [vmem:[%s6 + $0x18] sm:$0xff]
    %v239 = vld [vmem:[%s7] sm:$0xff]
    %v240 = vld [vmem:[%s7 + $0x8] sm:$0xff]
    %v241 = vld [vmem:[%s7 + $0x10] sm:$0xff]
    %v242 = vld [vmem:[%s7 + $0x18] sm:$0xff]
    %vm243 = vcmask 261120
    %v245 = vsel %vm243, %v234, 0
    %247 = vmatprep.subr.mxu0 0.0
    %248 = vmatpush1.msra.mxu0 0.0
    %249 = vmatprep.subr.mxu0 0.0
    %250 = vmatpush1.msra.mxu0 0.0
    %251 = vmatprep.subr.mxu0 0.0
    %252 = vmatpush1.msra.mxu0 0.0
    %253 = vmatprep.subr.mxu0 0.0
    %254 = vmatpush1.msra.mxu0 0.0
    %255 = vmatprep.subr.mxu0 0.0
    %256 = vmatpush1.msra.mxu0 0.0
    %257 = vmatprep.subr.mxu0 0.0
    %258 = vmatpush1.msra.mxu0 0.0
    %259 = vmatprep.subr.mxu0 0.0
    %260 = vmatpush1.msra.mxu0 0.0
    %261 = vmatprep.subr.mxu0 0.0
    %262 = vmatpush1.msra.mxu0 0.0
    %263 = vmatprep.subr.mxu0 0.0
    %264 = vmatpush1.msra.mxu0 0.0
    %265 = vmatprep.subr.mxu0 0.0
    %266 = vmatpush1.msra.mxu0 0.0
    %267 = vmatprep.subr.mxu0 0.0
    %268 = vmatpush1.msra.mxu0 0.0
    %269 = vmatprep.subr.mxu0 0.0
    %270 = vmatpush1.msra.mxu0 0.0
    %271 = vmatprep.subr.mxu0 0.0
    %272 = vmatpush1.msra.mxu0 %v242
    %273 = vmatprep.subr.mxu0 0.0
    %274 = vmatpush1.msra.mxu0 %v241
    %275 = vmatprep.subr.mxu0 0.0
    %276 = vmatpush1.msra.mxu0 %v240
    %277 = vmatprep.subr.mxu0 0.0
    %278 = vmatpush1.msra.mxu0 %v239
    %279 = vmatprep.subr.mxu0 0.0
    %280 = vmatpush2.msra.mxu0 0.0
    %281 = vmatprep.subr.mxu0 0.0
    %282 = vmatpush2.msra.mxu0 0.0
    %283 = vmatprep.subr.mxu0 0.0
    %284 = vmatpush2.msra.mxu0 0.0
    %285 = vmatprep.subr.mxu0 0.0
    %286 = vmatpush2.msra.mxu0 0.0
    %287 = vmatprep.subr.mxu0 0.0
    %288 = vmatpush2.msra.mxu0 0.0
    %289 = vmatprep.subr.mxu0 0.0
    %290 = vmatpush2.msra.mxu0 0.0
    %291 = vmatprep.subr.mxu0 0.0
    %292 = vmatpush2.msra.mxu0 0.0
    %293 = vmatprep.subr.mxu0 0.0
    %294 = vmatpush2.msra.mxu0 0.0
    %295 = vmatprep.subr.mxu0 0.0
    %296 = vmatpush2.msra.mxu0 0.0
    %297 = vmatprep.subr.mxu0 0.0
    %298 = vmatpush2.msra.mxu0 0.0
    %299 = vmatprep.subr.mxu0 0.0
    %300 = vmatpush2.msra.mxu0 0.0
    %301 = vmatprep.subr.mxu0 0.0
    %302 = vmatpush2.msra.mxu0 0.0
    %303 = vmatprep.subr.mxu0 0.0
    %304 = vmatpush2.msra.mxu0 0.0
    %305 = vmatprep.subr.mxu0 0.0
    %306 = vmatpush2.msra.mxu0 0.0
    %307 = vmatprep.subr.mxu0 0.0
    %308 = vmatpush2.msra.mxu0 0.0
    %309 = vmatprep.subr.mxu0 0.0
    %310 = vmatpush2.msra.mxu0 0.0
    %311 = vmatprep.mubr.f32.mxu0 0.0
    %312 = vmatmul.mubr.f32.gmra.mxu0 %v245
    %v313 = vpop.f32.mrf.mxu0
    %v314 = vadd.f32 0.0, %v313
    %v315 = vpop.f32.mrf.mxu0
    %316 = vdwg.mxu0
    %v318 = vsel %vm243, %v219, 0
    %320 = vmatprep.subr.mxu0 0.0
    %321 = vmatpush1.msra.mxu0 0.0
    %322 = vmatprep.subr.mxu0 0.0
    %323 = vmatpush1.msra.mxu0 0.0
    %324 = vmatprep.subr.mxu0 0.0
    %325 = vmatpush1.msra.mxu0 0.0
    %326 = vmatprep.subr.mxu0 0.0
    %327 = vmatpush1.msra.mxu0 0.0
    %328 = vmatprep.subr.mxu0 0.0
    %329 = vmatpush1.msra.mxu0 0.0
    %330 = vmatprep.subr.mxu0 0.0
    %331 = vmatpush1.msra.mxu0 0.0
    %332 = vmatprep.subr.mxu0 0.0
    %333 = vmatpush1.msra.mxu0 0.0
    %334 = vmatprep.subr.mxu0 0.0
    %335 = vmatpush1.msra.mxu0 0.0
    %336 = vmatprep.subr.mxu0 0.0
    %337 = vmatpush1.msra.mxu0 0.0
    %338 = vmatprep.subr.mxu0 0.0
    %339 = vmatpush1.msra.mxu0 0.0
    %340 = vmatprep.subr.mxu0 0.0
    %341 = vmatpush1.msra.mxu0 0.0
    %342 = vmatprep.subr.mxu0 0.0
    %343 = vmatpush1.msra.mxu0 0.0
    %344 = vmatprep.subr.mxu0 0.0
    %345 = vmatpush1.msra.mxu0 %v238
    %346 = vmatprep.subr.mxu0 0.0
    %347 = vmatpush1.msra.mxu0 %v237
    %348 = vmatprep.subr.mxu0 0.0
    %349 = vmatpush1.msra.mxu0 %v236
    %350 = vmatprep.subr.mxu0 0.0
    %351 = vmatpush1.msra.mxu0 %v235
    %352 = vmatprep.subr.mxu0 0.0
    %353 = vmatpush2.msra.mxu0 0.0
    %354 = vmatprep.subr.mxu0 0.0
    %355 = vmatpush2.msra.mxu0 0.0
    %356 = vmatprep.subr.mxu0 0.0
    %357 = vmatpush2.msra.mxu0 0.0
    %358 = vmatprep.subr.mxu0 0.0
    %359 = vmatpush2.msra.mxu0 0.0
    %360 = vmatprep.subr.mxu0 0.0
    %361 = vmatpush2.msra.mxu0 0.0
    %362 = vmatprep.subr.mxu0 0.0
    %363 = vmatpush2.msra.mxu0 0.0
    %364 = vmatprep.subr.mxu0 0.0
    %365 = vmatpush2.msra.mxu0 0.0
    %366 = vmatprep.subr.mxu0 0.0
    %367 = vmatpush2.msra.mxu0 0.0
    %368 = vmatprep.subr.mxu0 0.0
    %369 = vmatpush2.msra.mxu0 0.0
    %370 = vmatprep.subr.mxu0 0.0
    %371 = vmatpush2.msra.mxu0 0.0
    %372 = vmatprep.subr.mxu0 0.0
    %373 = vmatpush2.msra.mxu0 0.0
    %374 = vmatprep.subr.mxu0 0.0
    %375 = vmatpush2.msra.mxu0 0.0
    %376 = vmatprep.subr.mxu0 0.0
    %377 = vmatpush2.msra.mxu0 0.0
    %378 = vmatprep.subr.mxu0 0.0
    %379 = vmatpush2.msra.mxu0 0.0
    %380 = vmatprep.subr.mxu0 0.0
    %381 = vmatpush2.msra.mxu0 0.0
    %382 = vmatprep.subr.mxu0 0.0
    %383 = vmatpush2.msra.mxu0 0.0
    %384 = vmatprep.mubr.f32.mxu0 0.0
    %385 = vmatmul.mubr.f32.gmra.mxu0 %v318
    %v386 = vpop.f32.mrf.mxu0
    %v387 = vadd.f32 %v314, %v386
    %v388 = vpop.f32.mrf.mxu0
    %389 = vdwg.mxu0
    %v390 = vld [vmem:[%s8] sm:$0x1]
    %v392 = vlaneseq
    %v393 = vshrl.u32 %v392, 7
    %v394 = vsub.s32 0, %v393
    %v395 = vrot.slane %v390, %v394
    %v397 = vadd.f32 %v387, %v395
    %v398 = vlaneseq
    %v399 = vand.u32 %v398, 127
    %vm400 = vcmp.lt.s32.totalorder %v399, 8
    %v401 = vmul.f32 %v397, 1.442695
    %v402 = vpow.pop %v401
    %v403 = vsel %vm400, %v397, %v402
    %404 = vst.msk [vmem:[#allocation2] sm:$0xff] %vm43, %v403
    // Predicated region
    $region38: #{tpu_custom_call.1} parent=1 // pred_check
      _
    $region39: #{tpu_custom_call.1} parent=1 // pred_check_branch
      %406 = sbr.rel (0) target = $region41
    $region40: #{tpu_custom_call.1} parent=1 // pred_region
      %s408 = ssub.s32 128, 128
      %409 = vsyncadd [#allocation3], %s408
      %s411 = sshll.u32 [#allocation2], 4
      %s412 = int_to_ptr.vmem [resolvable:$true] %s411
      %414 = dma.vmem_to_hbm [thread:$0]  %s412, 128, %s9, [#allocation3]
    $region41: #{tpu_custom_call.1} parent=1 // pred_fallthru
      _
    // Predicated region
    $region42: #{tpu_custom_call.1} parent=1 // pred_check
      _
    $region43: #{tpu_custom_call.1} parent=1 // pred_check_branch
      %416 = sbr.rel (0) target = $region45
    $region44: #{tpu_custom_call.1} parent=1 // pred_region
      %417 = dma.done [#allocation3], 128
    $region45: #{tpu_custom_call.1} parent=1 // pred_fallthru
      _
    %418 = vsyncpa [#allocation3], 1

</llo_original>
